<compile_context>
chip_gen: v5e
topology: v5e:2x2
jax: 0.10.0
libtpu: 0.0.40
codegen_flags: <defaults>
</compile_context>

<pallas_src>
import functools

import jax
import jax.numpy as jnp
from jax.experimental import pallas as pl
from jax.experimental.pallas import tpu as pltpu

_LANE = 128
_SMALL_BYPASS_BYTES = 1 << 20  # below this, plain XLA fusion wins


def _affine_kernel(gain_ref, bias_ref, x_ref, o_ref):
    # gain_ref / bias_ref live in SMEM as shape-(1,) scalars.
    g = gain_ref[0]
    b = bias_ref[0]
    o_ref[...] = (x_ref[...] * g + b).astype(o_ref.dtype)


def _round_up(a, m):
    return -(-a // m) * m


def _sublane(dtype):
    """Native sublane tile for the dtype (8 for 32-bit, 16 for 16-bit, 32 for 8-bit)."""
    bits = jnp.dtype(dtype).itemsize * 8
    return max(8, 256 // bits)


@functools.lru_cache(maxsize=None)
def _vmem_budget_bytes():
    """Generation-aware scoped-VMEM budget with headroom."""
    cap = None
    try:
        info = pltpu.get_tpu_info()
        for attr in ("vmem_capacity_bytes", "vmem_bytes", "vmem_size_bytes"):
            v = getattr(info, attr, None)
            if v:
                cap = int(v)
                break
    except Exception:
        cap = None
    if not cap:
        cap = 64 << 20  # conservative: assume v7x-sized VMEM
    # ~3/4 of physical, clamped: v7x (64 MiB) -> 48 MiB; v5e/v6e (128 MiB) -> 96 MiB.
    return int(min(96 << 20, max(32 << 20, (cap * 3) // 4)))


@functools.lru_cache(maxsize=None)
def _num_tensorcores():
    """TensorCores sharing the grid under dimension_semantics=('parallel',)."""
    try:
        info = pltpu.get_tpu_info()
        for attr in ("num_cores", "core_count", "num_tensorcores", "tensorcore_count"):
            v = getattr(info, attr, None)
            if v:
                return int(v)
    except Exception:
        pass
    try:
        kind = jax.devices()[0].device_kind.lower()
        if "v7" in kind:
            return 2
    except Exception:
        pass
    return 1


def _choose_block_rows(rows, cols, itemsize, sublane, num_cores, vmem_budget):
    """Pick the sublane block extent.

    Large blocks (<= ~8 MiB, bounded by the per-generation VMEM budget over
    4 buffers: in+out, double-buffered) amortize the ~0.35 us per-grid-step
    overhead.  On multi-TensorCore parts the grid length is kept a multiple of
    the core count so both cores get balanced work; single-TC parts never pay
    for a forced split.
    """
    row_bytes = cols * itemsize
    max_block_bytes = max(row_bytes * sublane, min(8 << 20, vmem_budget // 4))
    max_rows = max(sublane, (max_block_bytes // row_bytes) // sublane * sublane)

    if rows <= sublane:
        return rows  # block == full extent (always a legal tiling)

    block = min(_round_up(rows, sublane), max_rows)
    if block >= rows:
        block = rows  # single full-extent block, no boundary masking needed
    grid = pl.cdiv(rows, block)
    if num_cores > 1:
        grid = max(num_cores, _round_up(grid, num_cores))
        block = min(block, max(sublane, _round_up(pl.cdiv(rows, grid), sublane)))
    return int(block)


def _affine_2d(x2d, gain, bias, *, vmem_budget, num_cores, donate=False):
    """Aligned fast path: lane-dense (rows, 128) slab."""
    rows, cols = x2d.shape
    itemsize = jnp.dtype(x2d.dtype).itemsize
    sublane = _sublane(x2d.dtype)
    block_rows = _choose_block_rows(rows, cols, itemsize, sublane, num_cores, vmem_budget)
    grid = (pl.cdiv(rows, block_rows),)

    return pl.pallas_call(
        _affine_kernel,
        out_shape=jax.ShapeDtypeStruct((rows, cols), x2d.dtype),
        grid_spec=pl.GridSpec(
            grid=grid,
            in_specs=[
                pl.BlockSpec(memory_space=pltpu.SMEM),          # gain (1,)
                pl.BlockSpec(memory_space=pltpu.SMEM),          # bias (1,)
                pl.BlockSpec((block_rows, cols), lambda i: (i, 0)),
            ],
            out_specs=pl.BlockSpec((block_rows, cols), lambda i: (i, 0)),
        ),
        input_output_aliases=({2: 0} if donate else {}),
        compiler_params=pltpu.CompilerParams(
            dimension_semantics=("parallel",),
            vmem_limit_bytes=vmem_budget,
        ),
    )(gain, bias, x2d)


def _affine_ragged(x_flat, gain, bias, *, vmem_budget, donate=False):
    """Ragged path (numel % 128 != 0): (1, n) view, lane-blocked, no pad/slice
    HBM passes.  Pallas masks the partial boundary block."""
    n = x_flat.shape[0]
    # A (1, C) block pads the sublane dim to the native tile in VMEM
    # (~32 bytes per element regardless of dtype); size blocks accordingly.
    padded_bytes_per_elem = 32
    max_cols = max(
        _LANE,
        (min(vmem_budget, 32 << 20) // (4 * padded_bytes_per_elem)) // _LANE * _LANE,
    )
    if n <= max_cols:
        block_cols = n  # single full-extent block (always legal)
    else:
        block_cols = max_cols  # multiple of 128; last partial block masked
    grid = (pl.cdiv(n, block_cols),)

    x2d = x_flat.reshape(1, n)
    out = pl.pallas_call(
        _affine_kernel,
        out_shape=jax.ShapeDtypeStruct((1, n), x_flat.dtype),
        grid_spec=pl.GridSpec(
            grid=grid,
            in_specs=[
                pl.BlockSpec(memory_space=pltpu.SMEM),          # gain (1,)
                pl.BlockSpec(memory_space=pltpu.SMEM),          # bias (1,)
                pl.BlockSpec((1, block_cols), lambda i: (0, i)),
            ],
            out_specs=pl.BlockSpec((1, block_cols), lambda i: (0, i)),
        ),
        input_output_aliases=({2: 0} if donate else {}),
        compiler_params=pltpu.CompilerParams(
            dimension_semantics=("parallel",),
            vmem_limit_bytes=vmem_budget,
        ),
    )(gain, bias, x2d)
    return out.reshape(n)


def affine(x, gain, bias, *, force_pallas=False, donate=False):
    """y = x * gain + bias. x: any-shape array; gain, bias: scalar / shape-(1,)."""
    orig_shape = x.shape
    n = x.size
    if n == 0:
        return x

    gain = jnp.reshape(jnp.asarray(gain), (1,))
    bias = jnp.reshape(jnp.asarray(bias), (1,))
    itemsize = jnp.dtype(x.dtype).itemsize

    # Small-tensor bypass: launch overhead dominates; let XLA fuse it.
    if not force_pallas and n * itemsize < _SMALL_BYPASS_BYTES:
        return (x * gain[0] + bias[0]).astype(x.dtype)

    vmem_budget = _vmem_budget_bytes()
    num_cores = _num_tensorcores()

    if n % _LANE == 0:
        # Fast path: pure reshape to a lane-dense slab; no pad/copy in HBM.
        x2d = x.reshape(n // _LANE, _LANE)
        out = _affine_2d(x2d, gain, bias, vmem_budget=vmem_budget,
                         num_cores=num_cores, donate=donate)
        return out.reshape(orig_shape)

    # Ragged fallback: handled in-kernel via Pallas boundary masking.
    out = _affine_ragged(x.reshape(-1), gain, bias,
                         vmem_budget=vmem_budget, donate=donate)
    return out.reshape(orig_shape)


if __name__ == "__main__":
    key = jax.random.PRNGKey(0)
    x = jax.random.normal(key, (2, 4, 16, 16), dtype=jnp.float32)

    # Parameter init matching nn.Parameter(torch.ones(1)) / torch.zeros(1).
    gain = jnp.ones((1,), dtype=jnp.float32)
    bias = jnp.zeros((1,), dtype=jnp.float32)

    # Force the Pallas path so the kernel itself is exercised even though the
    # default wrapper would bypass pallas_call for an 8 KiB input.
    y = jax.block_until_ready(affine(x, gain, bias, force_pallas=True))
    assert y.shape == x.shape and y.dtype == x.dtype
    assert jnp.allclose(y, x * gain + bias, atol=1e-6), "mismatch (identity params)"

    # Non-trivial affine parameters.
    gain2 = jnp.array([1.5], dtype=jnp.float32)
    bias2 = jnp.array([-0.25], dtype=jnp.float32)
    y2 = jax.block_until_ready(affine(x, gain2, bias2, force_pallas=True))
    assert jnp.allclose(y2, x * gain2 + bias2, atol=1e-6), "mismatch (aligned path)"

    # Ragged path (numel % 128 != 0) exercised through the Pallas kernel.
    xr = jax.random.normal(jax.random.PRNGKey(1), (3, 5, 7), dtype=jnp.float32)
    yr = jax.block_until_ready(affine(xr, gain2, bias2, force_pallas=True))
    assert yr.shape == xr.shape and yr.dtype == xr.dtype
    assert jnp.allclose(yr, xr * gain2 + bias2, atol=1e-6), "mismatch (ragged path)"

    # Default wrapper (small-tensor bypass) must agree with the kernel output.
    yb = jax.block_until_ready(affine(x, gain2, bias2))
    assert jnp.allclose(yb, y2, atol=1e-6), "mismatch (bypass vs kernel)"

    print("KERNEL_OK")
</pallas_src>

<mosaic_0001>
module attributes {stable_mosaic.version = 11 : i64} {
  func.func @_affine_kernel(%arg0: i32, %arg1: memref<1xf32, #tpu.memory_space<smem>>, %arg2: memref<1xf32, #tpu.memory_space<smem>>, %arg3: memref<16x128xf32, #tpu.memory_space<vmem>>, %arg4: memref<16x128xf32, #tpu.memory_space<vmem>>) attributes {dimension_semantics = [#tpu.dimension_semantics<parallel>], iteration_bounds = array<i64: 1>, scalar_prefetch = 0 : i64, scratch_operands = 0 : i64, tpu.core_type = #tpu.core_type<tc>, window_params = [{transform_indices = @transform_0, window_bounds = array<i64: 1>}, {transform_indices = @transform_1, window_bounds = array<i64: 1>}, {transform_indices = @transform_2, window_bounds = array<i64: 16, 128>}, {transform_indices = @transform_3, window_bounds = array<i64: 16, 128>}]} {
    %c0 = arith.constant 0 : index
    %0 = memref.load %arg1[%c0] : memref<1xf32, #tpu.memory_space<smem>>
    %c0_0 = arith.constant 0 : index
    %1 = memref.load %arg2[%c0_0] : memref<1xf32, #tpu.memory_space<smem>>
    %c0_1 = arith.constant 0 : index
    %c0_2 = arith.constant 0 : index
    %2 = vector.load %arg3[%c0_1, %c0_2] : memref<16x128xf32, #tpu.memory_space<vmem>>, vector<16x128xf32>
    %3 = vector.broadcast %0 : f32 to vector<16x128xf32>
    %4 = arith.mulf %2, %3 : vector<16x128xf32>
    %5 = vector.broadcast %1 : f32 to vector<16x128xf32>
    %6 = arith.addf %4, %5 : vector<16x128xf32>
    %c0_3 = arith.constant 0 : index
    %c0_4 = arith.constant 0 : index
    %7 = vector.load %arg4[%c0_3, %c0_4] : memref<16x128xf32, #tpu.memory_space<vmem>>, vector<16x128xf32>
    tpu.vector_store %arg4[%c0_3, %c0_4], %6 {strides = array<i32>} : memref<16x128xf32, #tpu.memory_space<vmem>>, vector<16x128xf32>,
    return
  }
  func.func @transform_0(%arg0: i32) -> i32 {
    %c0_i32 = arith.constant 0 : i32
    %c0_i32_0 = arith.constant 0 : i32
    return %c0_i32 : i32
  }
  func.func @transform_1(%arg0: i32) -> i32 {
    %c0_i32 = arith.constant 0 : i32
    %c0_i32_0 = arith.constant 0 : i32
    return %c0_i32 : i32
  }
  func.func @transform_2(%arg0: i32) -> (i32, i32) {
    %c0_i32 = arith.constant 0 : i32
    %c0_i32_0 = arith.constant 0 : i32
    return %arg0, %c0_i32 : i32, i32
  }
  func.func @transform_3(%arg0: i32) -> (i32, i32) {
    %c0_i32 = arith.constant 0 : i32
    %c0_i32_0 = arith.constant 0 : i32
    return %arg0, %c0_i32 : i32, i32
  }
}

</mosaic_0001>

<llo_original>
// kernel: tpu_custom_call.1
$region0: #{tpu_custom_call.1}
  #allocation0 [shape = 'u32[]', space=smem, size = 0x4, offset = 0x4, fixed_abs, tag = 'smem constant byte address 0x4 - core index']
  #allocation1 [shape = 'u32[72,128]{1,0:T(1,128)}', space=vmem, size = 0x9000, scoped, tag = 'internal scratch']
  #allocation2 [shape = 'f32[1]{0:T(128)S(6)}', space=smem, size = 0x200, scoped, tag = 'scoped memory for tpu_custom_call.1']
  #allocation3 [shape = 'f32[1]{0:T(128)S(6)}', space=smem, size = 0x200, scoped, tag = 'scoped memory for tpu_custom_call.1']
  %s0 = inlined_call_operand.<no memory space> [shape: f32[1], index: 0, kind: input, shape index: {}]
  %s1 = inlined_call_operand.<no memory space> [shape: f32[1], index: 1, kind: input, shape index: {}]
  %s2 = inlined_call_operand.hbm [shape: f32[16,128], index: 2, kind: input, shape index: {}]
  %s3 = inlined_call_operand.hbm [shape: f32[16,128], index: 3, kind: output, shape index: {}]
  %s4 = sld [smem:[#allocation0]]
  $region26: #{tpu_custom_call.1} parent=0
    _
  %s6 = ssub.s32 1, %s4
  %s7 = scalar_select 0, %s6, %s4
  %8 = sst [smem:[#allocation2]] %s0
  %9 = sst [smem:[#allocation3]] %s1
  $region1: #{tpu_custom_call.1} parent=0
    #allocation4 [shape = 'u8[8192]{0}', space=vmem, size = 0x2000, scoped, tag = 'input window, operand 2, single buffered']
    #allocation5 [shape = 's32[1]{0}', space=sflag, size = 0x4, scoped, tag = 'scoped memory for tpu_custom_call.1']
    #allocation6 [shape = 's32[1]{0}', space=sflag, size = 0x4, scoped, tag = 'scoped memory for tpu_custom_call.1']
    #allocation7 [shape = 'u8[8192]{0}', space=vmem, size = 0x2000, scoped, tag = 'output window, operand 0, single buffered']
    %10 = vsyncpa [#allocation5], 0
    %11 = vsyncpa [#allocation6], 0
    // Predicated region
    $region2: #{tpu_custom_call.1} parent=1 // pred_check
      _
    $region3: #{tpu_custom_call.1} parent=1 // pred_check_branch
      %13 = sbr.rel (0) target = $region5
    $region4: #{tpu_custom_call.1} parent=1 // pred_region
      _
    $region5: #{tpu_custom_call.1} parent=1 // pred_fallthru
      _
    // Predicated region
    $region6: #{tpu_custom_call.1} parent=1 // pred_check
      _
    $region7: #{tpu_custom_call.1} parent=1 // pred_check_branch
      %15 = sbr.rel (0) target = $region9
    $region8: #{tpu_custom_call.1} parent=1 // pred_region
      _
    $region9: #{tpu_custom_call.1} parent=1 // pred_fallthru
      _
    // Predicated region
    $region10: #{tpu_custom_call.1} parent=1 // pred_check
      _
    $region11: #{tpu_custom_call.1} parent=1 // pred_check_branch
      %17 = sbr.rel (0) target = $region13
    $region12: #{tpu_custom_call.1} parent=1 // pred_region
      %19 = vsyncadd [#allocation5], 0
      %s20 = sshll.u32 %s2, 4
      %s21 = int_to_ptr.hbm [resolvable:$true] %s20
      %s22 = sshll.u32 [#allocation4], 4
      %s23 = int_to_ptr.vmem [resolvable:$true] %s22
      %28 = dma.hbm_to_vmem [thread:$0]  %s21, 256, %s23, [#allocation5], 128, 128, 8
    $region13: #{tpu_custom_call.1} parent=1 // pred_fallthru
      _
    // Predicated region
    $region14: #{tpu_custom_call.1} parent=1 // pred_check
      _
    $region15: #{tpu_custom_call.1} parent=1 // pred_check_branch
      %30 = sbr.rel (0) target = $region17
    $region16: #{tpu_custom_call.1} parent=1 // pred_region
      %32 = dma.done [#allocation5], 256
    $region17: #{tpu_custom_call.1} parent=1 // pred_fallthru
      _
    %s33 = sld [smem:[#allocation2]]
    %s34 = sld [smem:[#allocation3]]
    %v35 = vld [vmem:[#allocation4] sm:$0xff]
    %v36 = vld [vmem:[#allocation4 + $0x8] sm:$0xff]
    %v37 = vstv %s33
    %v38 = vmul.f32 %v35, %v37
    %v39 = vmul.f32 %v36, %v37
    %v40 = vstv %s34
    %v41 = vadd.f32 %v38, %v40
    %v42 = vadd.f32 %v39, %v40
    %43 = vst [vmem:[#allocation7] sm:$0xff] %v41
    %44 = vst [vmem:[#allocation7 + $0x8] sm:$0xff] %v42
    // Predicated region
    $region18: #{tpu_custom_call.1} parent=1 // pred_check
      _
    $region19: #{tpu_custom_call.1} parent=1 // pred_check_branch
      %46 = sbr.rel (0) target = $region21
    $region20: #{tpu_custom_call.1} parent=1 // pred_region
      %48 = vsyncadd [#allocation6], 0
      %s49 = sshll.u32 [#allocation7], 4
      %s50 = int_to_ptr.vmem [resolvable:$true] %s49
      %s51 = sshll.u32 %s3, 4
      %s52 = int_to_ptr.hbm [resolvable:$true] %s51
      %57 = dma.vmem_to_hbm [thread:$0]  %s50, 256, %s52, [#allocation6], 128, 128, 8
    $region21: #{tpu_custom_call.1} parent=1 // pred_fallthru
      _
    // Predicated region
    $region22: #{tpu_custom_call.1} parent=1 // pred_check
      _
    $region23: #{tpu_custom_call.1} parent=1 // pred_check_branch
      %59 = sbr.rel (0) target = $region25
    $region24: #{tpu_custom_call.1} parent=1 // pred_region
      %61 = dma.done [#allocation6], 256
    $region25: #{tpu_custom_call.1} parent=1 // pred_fallthru
      _
    %62 = vsyncpa [#allocation5], 1
    %63 = vsyncpa [#allocation6], 1

</llo_original>
